<compile_context>
chip_gen: v5e
topology: v5e:2x2
jax: 0.10.0
libtpu: 0.0.40
codegen_flags: <defaults>
</compile_context>

<pallas_src>
import functools

import jax
import jax.numpy as jnp
from jax.experimental import pallas as pl
from jax.experimental.pallas import tpu as pltpu


HIDDEN = 128


def naf_kernel(x_ref, w1_ref, b1_ref, wh_ref, bh_ref,
               v_ref, mu_ref, l_ref, *, action_dim, l_dim):
    # Feature trunk: Linear + ReLU.  x arrives as f32 and is cast to bf16 here
    # (cast is free under the DMA shadow); MXU accumulates in f32; bias add +
    # ReLU stay in f32 (v5e VPU has no bf16).
    x_bf = x_ref[...].astype(w1_ref.dtype)
    feat = jnp.dot(x_bf, w1_ref[...], preferred_element_type=jnp.float32)
    feat = jnp.maximum(feat + b1_ref[...], 0.0)

    # Single fused, lane-dense head matmul: [tb, 128] @ [128, 128] (zero-padded
    # lanes beyond the 1 + action_dim + l_dim real head columns).
    heads = jnp.dot(feat.astype(wh_ref.dtype), wh_ref[...],
                    preferred_element_type=jnp.float32)
    heads = heads + bh_ref[...]

    # Narrow stores: only the real head columns go back to HBM.
    v_ref[...] = heads[:, 0:1].astype(v_ref.dtype)
    mu_ref[...] = heads[:, 1:1 + action_dim].astype(mu_ref.dtype)
    l_ref[...] = heads[:, 1 + action_dim:1 + action_dim + l_dim].astype(l_ref.dtype)


@functools.partial(jax.jit, static_argnames=("batch_tile",))
def naf_forward(x, params, *, batch_tile=2048):
    """Runs the NAF forward pass.  x: [B, input_dim] float32.

    Returns (value [B,1], mu [B,action_dim], L [B,action_dim*(action_dim+1)//2]),
    all float32.
    """
    w1t, b1, wvt, bv, wmut, bmu, wlt, bl = params
    B, input_dim = x.shape
    action_dim = wmut.shape[1]
    l_dim = wlt.shape[1]
    head_dim = 1 + action_dim + l_dim

    # Fuse the three heads into one lane-dense weight/bias slab, zero-padded to
    # a multiple of 128 lanes so the head matmul is a single dense MXU op.
    head_pad = max(HIDDEN, ((head_dim + 127) // 128) * 128)
    wh = jnp.concatenate([wvt, wmut, wlt], axis=1)          # [128, head_dim]
    wh = jnp.pad(wh, ((0, 0), (0, head_pad - head_dim)))    # [128, head_pad]
    bh = jnp.concatenate([bv, bmu, bl], axis=1)             # [1, head_dim]
    bh = jnp.pad(bh, ((0, 0), (0, head_pad - head_dim)))    # [1, head_pad]

    # Weights are tiny: cast once in the wrapper.  x stays f32 (cast in-kernel).
    w1_bf = w1t.astype(jnp.bfloat16)
    wh_bf = wh.astype(jnp.bfloat16)

    # Batch tile: multiple of 8 (f32 sublane) unless it covers the whole batch.
    tb = min(batch_tile, B)
    if tb < B:
        tb = max(8, (tb // 8) * 8)
    grid = (pl.cdiv(B, tb),)

    rep = lambda shape: pl.BlockSpec(shape, lambda i: (0, 0))

    kernel = functools.partial(naf_kernel, action_dim=action_dim, l_dim=l_dim)

    value, mu, L = pl.pallas_call(
        kernel,
        out_shape=(
            jax.ShapeDtypeStruct((B, 1), jnp.float32),
            jax.ShapeDtypeStruct((B, action_dim), jnp.float32),
            jax.ShapeDtypeStruct((B, l_dim), jnp.float32),
        ),
        grid_spec=pltpu.PrefetchScalarGridSpec(
            num_scalar_prefetch=0,
            grid=grid,
            in_specs=[
                pl.BlockSpec((tb, input_dim), lambda i: (i, 0)),   # x (f32)
                rep((input_dim, HIDDEN)),                          # W1^T (bf16)
                rep((1, HIDDEN)),                                  # b1 (f32)
                rep((HIDDEN, head_pad)),                           # fused heads W^T (bf16)
                rep((1, head_pad)),                                # fused heads bias (f32)
            ],
            out_specs=[
                pl.BlockSpec((tb, 1), lambda i: (i, 0)),           # value
                pl.BlockSpec((tb, action_dim), lambda i: (i, 0)),  # mu
                pl.BlockSpec((tb, l_dim), lambda i: (i, 0)),       # L
            ],
        ),
        compiler_params=pltpu.CompilerParams(
            dimension_semantics=("parallel",),
            vmem_limit_bytes=32 * 1024 * 1024,
        ),
    )(x, w1_bf, b1, wh_bf, bh)

    return value, mu, L


def init_params(key, input_dim, action_dim):
    """Deterministic init mimicking PyTorch nn.Linear default (U[-1/sqrt(fan_in), +])."""
    l_dim = action_dim * (action_dim + 1) // 2
    keys = jax.random.split(key, 8)

    def linear(kw, kb, fan_in, fan_out):
        bound = 1.0 / jnp.sqrt(float(fan_in))
        # store already transposed: [fan_in, fan_out]
        w_t = jax.random.uniform(kw, (fan_in, fan_out), jnp.float32, -bound, bound)
        b = jax.random.uniform(kb, (1, fan_out), jnp.float32, -bound, bound)
        return w_t, b

    w1t, b1 = linear(keys[0], keys[1], input_dim, HIDDEN)
    wvt, bv = linear(keys[2], keys[3], HIDDEN, 1)
    wmut, bmu = linear(keys[4], keys[5], HIDDEN, action_dim)
    wlt, bl = linear(keys[6], keys[7], HIDDEN, l_dim)
    return (w1t, b1, wvt, bv, wmut, bmu, wlt, bl)


def naf_reference(x, params):
    """Pure-JAX f32 reference matching the PyTorch module."""
    w1t, b1, wvt, bv, wmut, bmu, wlt, bl = params
    feat = jnp.maximum(x @ w1t + b1, 0.0)
    return (feat @ wvt + bv, feat @ wmut + bmu, feat @ wlt + bl)


def _check(x, params, action_dim, l_dim, tol, **kwargs):
    value, mu, L = naf_forward(x, params, **kwargs)
    jax.block_until_ready((value, mu, L))
    value_ref, mu_ref, L_ref = naf_reference(x, params)
    B = x.shape[0]
    assert value.shape == (B, 1)
    assert mu.shape == (B, action_dim)
    assert L.shape == (B, l_dim)
    assert jnp.allclose(value, value_ref, **tol)
    assert jnp.allclose(mu, mu_ref, **tol)
    assert jnp.allclose(L, L_ref, **tol)


if __name__ == "__main__":
    key = jax.random.PRNGKey(0)
    k_p, k1, k2, k3, k4 = jax.random.split(key, 5)

    input_dim = 16
    action_dim = 4
    l_dim = action_dim * (action_dim + 1) // 2
    params = init_params(k_p, input_dim, action_dim)

    # bf16 matmul operands -> compare to the f32 reference with bf16-level tolerance.
    TOL = dict(atol=5e-2, rtol=5e-2)

    # Small single-tile case.
    _check(jax.random.normal(k1, (8, input_dim), jnp.float32),
           params, action_dim, l_dim, TOL)

    # Multi-step grid with a partial last batch block (40 = 16 + 16 + 8).
    _check(jax.random.normal(k2, (40, input_dim), jnp.float32),
           params, action_dim, l_dim, TOL, batch_tile=16)

    # Batch not a multiple of 8 but covered by a single full-extent tile.
    _check(jax.random.normal(k3, (12, input_dim), jnp.float32),
           params, action_dim, l_dim, TOL)

    # batch_tile not a multiple of 8 -> rounded down to a legal sublane tile.
    _check(jax.random.normal(k4, (40, input_dim), jnp.float32),
           params, action_dim, l_dim, TOL, batch_tile=12)

    print("KERNEL_OK")
</pallas_src>

<mosaic_0001>
module attributes {stable_mosaic.version = 11 : i64} {
  func.func @naf_kernel(%arg0: i32, %arg1: memref<8x16xf32, #tpu.memory_space<vmem>>, %arg2: memref<16x128xbf16, #tpu.memory_space<vmem>>, %arg3: memref<1x128xf32, #tpu.memory_space<vmem>>, %arg4: memref<128x128xbf16, #tpu.memory_space<vmem>>, %arg5: memref<1x128xf32, #tpu.memory_space<vmem>>, %arg6: memref<8x1xf32, #tpu.memory_space<vmem>>, %arg7: memref<8x4xf32, #tpu.memory_space<vmem>>, %arg8: memref<8x10xf32, #tpu.memory_space<vmem>>) attributes {dimension_semantics = [#tpu.dimension_semantics<parallel>], iteration_bounds = array<i64: 1>, scalar_prefetch = 0 : i64, scratch_operands = 0 : i64, tpu.core_type = #tpu.core_type<tc>, window_params = [{transform_indices = @transform_0, window_bounds = array<i64: 8, 16>}, {pipeline_mode = #tpu.pipeline_mode<synchronous>, transform_indices = @transform_1, window_bounds = array<i64: 16, 128>}, {pipeline_mode = #tpu.pipeline_mode<synchronous>, transform_indices = @transform_2, window_bounds = array<i64: 1, 128>}, {pipeline_mode = #tpu.pipeline_mode<synchronous>, transform_indices = @transform_3, window_bounds = array<i64: 128, 128>}, {pipeline_mode = #tpu.pipeline_mode<synchronous>, transform_indices = @transform_4, window_bounds = array<i64: 1, 128>}, {transform_indices = @transform_5, window_bounds = array<i64: 8, 1>}, {transform_indices = @transform_6, window_bounds = array<i64: 8, 4>}, {transform_indices = @transform_7, window_bounds = array<i64: 8, 10>}]} {
    %c0 = arith.constant 0 : index
    %c0_0 = arith.constant 0 : index
    %0 = vector.load %arg1[%c0, %c0_0] : memref<8x16xf32, #tpu.memory_space<vmem>>, vector<8x16xf32>
    %1 = arith.truncf %0 : vector<8x16xf32> to vector<8x16xbf16>
    %c0_1 = arith.constant 0 : index
    %c0_2 = arith.constant 0 : index
    %2 = vector.load %arg2[%c0_1, %c0_2] : memref<16x128xbf16, #tpu.memory_space<vmem>>, vector<16x128xbf16>
    %cst = arith.constant dense<0.000000e+00> : vector<8x128xf32>
    %3 = tpu.matmul %1, %2, %cst {dimension_numbers = #tpu.dot_dimension_numbers<[1], [0], [0], [1], [0, 0, 1, 1], [], []>} : vector<8x16xbf16>, vector<16x128xbf16>, vector<8x128xf32> -> vector<8x128xf32>
    %c0_3 = arith.constant 0 : index
    %c0_4 = arith.constant 0 : index
    %4 = vector.load %arg3[%c0_3, %c0_4] : memref<1x128xf32, #tpu.memory_space<vmem>>, vector<1x128xf32>
    %5 = vector.broadcast %4 : vector<1x128xf32> to vector<8x128xf32>
    %6 = arith.addf %3, %5 : vector<8x128xf32>
    %cst_5 = arith.constant 0.000000e+00 : f32
    %7 = vector.broadcast %cst_5 : f32 to vector<8x128xf32>
    %8 = arith.maximumf %6, %7 : vector<8x128xf32>
    %9 = arith.truncf %8 : vector<8x128xf32> to vector<8x128xbf16>
    %c0_6 = arith.constant 0 : index
    %c0_7 = arith.constant 0 : index
    %10 = vector.load %arg4[%c0_6, %c0_7] : memref<128x128xbf16, #tpu.memory_space<vmem>>, vector<128x128xbf16>
    %cst_8 = arith.constant dense<0.000000e+00> : vector<8x128xf32>
    %11 = tpu.matmul %9, %10, %cst_8 {dimension_numbers = #tpu.dot_dimension_numbers<[1], [0], [0], [1], [0, 0, 1, 1], [], []>} : vector<8x128xbf16>, vector<128x128xbf16>, vector<8x128xf32> -> vector<8x128xf32>
    %c0_9 = arith.constant 0 : index
    %c0_10 = arith.constant 0 : index
    %12 = vector.load %arg5[%c0_9, %c0_10] : memref<1x128xf32, #tpu.memory_space<vmem>>, vector<1x128xf32>
    %13 = vector.broadcast %12 : vector<1x128xf32> to vector<8x128xf32>
    %14 = arith.addf %11, %13 : vector<8x128xf32>
    %15 = vector.extract_strided_slice %14 {offsets = [0, 0], sizes = [8, 1], strides = [1, 1]} : vector<8x128xf32> to vector<8x1xf32>
    %c0_11 = arith.constant 0 : index
    %c0_12 = arith.constant 0 : index
    %16 = vector.load %arg6[%c0_11, %c0_12] : memref<8x1xf32, #tpu.memory_space<vmem>>, vector<8x1xf32>
    tpu.vector_store %arg6[%c0_11, %c0_12], %15 {strides = array<i32>} : memref<8x1xf32, #tpu.memory_space<vmem>>, vector<8x1xf32>,
    %17 = vector.extract_strided_slice %14 {offsets = [0, 1], sizes = [8, 4], strides = [1, 1]} : vector<8x128xf32> to vector<8x4xf32>
    %c0_13 = arith.constant 0 : index
    %c0_14 = arith.constant 0 : index
    %18 = vector.load %arg7[%c0_13, %c0_14] : memref<8x4xf32, #tpu.memory_space<vmem>>, vector<8x4xf32>
    tpu.vector_store %arg7[%c0_13, %c0_14], %17 {strides = array<i32>} : memref<8x4xf32, #tpu.memory_space<vmem>>, vector<8x4xf32>,
    %19 = vector.extract_strided_slice %14 {offsets = [0, 5], sizes = [8, 10], strides = [1, 1]} : vector<8x128xf32> to vector<8x10xf32>
    %c0_15 = arith.constant 0 : index
    %c0_16 = arith.constant 0 : index
    %20 = vector.load %arg8[%c0_15, %c0_16] : memref<8x10xf32, #tpu.memory_space<vmem>>, vector<8x10xf32>
    tpu.vector_store %arg8[%c0_15, %c0_16], %19 {strides = array<i32>} : memref<8x10xf32, #tpu.memory_space<vmem>>, vector<8x10xf32>,
    return
  }
  func.func @transform_0(%arg0: i32) -> (i32, i32) {
    %c0_i32 = arith.constant 0 : i32
    %c0_i32_0 = arith.constant 0 : i32
    return %arg0, %c0_i32 : i32, i32
  }
  func.func @transform_1(%arg0: i32) -> (i32, i32) {
    %c0_i32 = arith.constant 0 : i32
    %c0_i32_0 = arith.constant 0 : i32
    %c0_i32_1 = arith.constant 0 : i32
    return %c0_i32, %c0_i32_0 : i32, i32
  }
  func.func @transform_2(%arg0: i32) -> (i32, i32) {
    %c0_i32 = arith.constant 0 : i32
    %c0_i32_0 = arith.constant 0 : i32
    %c0_i32_1 = arith.constant 0 : i32
    return %c0_i32, %c0_i32_0 : i32, i32
  }
  func.func @transform_3(%arg0: i32) -> (i32, i32) {
    %c0_i32 = arith.constant 0 : i32
    %c0_i32_0 = arith.constant 0 : i32
    %c0_i32_1 = arith.constant 0 : i32
    return %c0_i32, %c0_i32_0 : i32, i32
  }
  func.func @transform_4(%arg0: i32) -> (i32, i32) {
    %c0_i32 = arith.constant 0 : i32
    %c0_i32_0 = arith.constant 0 : i32
    %c0_i32_1 = arith.constant 0 : i32
    return %c0_i32, %c0_i32_0 : i32, i32
  }
  func.func @transform_5(%arg0: i32) -> (i32, i32) {
    %c0_i32 = arith.constant 0 : i32
    %c0_i32_0 = arith.constant 0 : i32
    return %arg0, %c0_i32 : i32, i32
  }
  func.func @transform_6(%arg0: i32) -> (i32, i32) {
    %c0_i32 = arith.constant 0 : i32
    %c0_i32_0 = arith.constant 0 : i32
    return %arg0, %c0_i32 : i32, i32
  }
  func.func @transform_7(%arg0: i32) -> (i32, i32) {
    %c0_i32 = arith.constant 0 : i32
    %c0_i32_0 = arith.constant 0 : i32
    return %arg0, %c0_i32 : i32, i32
  }
}

</mosaic_0001>

<llo_original>
// kernel: naf_forward.1
$region0: #{naf_forward.1}
  #allocation0 [shape = 'u32[]', space=smem, size = 0x4, offset = 0x4, fixed_abs, tag = 'smem constant byte address 0x4 - core index']
  #allocation1 [shape = 'u32[72,128]{1,0:T(1,128)}', space=vmem, size = 0x9000, scoped, tag = 'internal scratch']
  %s0 = inlined_call_operand.vmem [shape: f32[8,16], index: 0, kind: input, shape index: {}]
  %s1 = inlined_call_operand.vmem [shape: bf16[16,128], index: 1, kind: input, shape index: {}]
  %s2 = inlined_call_operand.vmem [shape: f32[1,128], index: 2, kind: input, shape index: {}]
  %s3 = inlined_call_operand.vmem [shape: bf16[128,128], index: 3, kind: input, shape index: {}]
  %s4 = inlined_call_operand.vmem [shape: f32[1,128], index: 4, kind: input, shape index: {}]
  %s5 = inlined_call_operand.vmem [shape: f32[8,1], index: 5, kind: output, shape index: {0}]
  %s6 = inlined_call_operand.vmem [shape: f32[8,4], index: 6, kind: output, shape index: {1}]
  %s7 = inlined_call_operand.hbm [shape: f32[8,10], index: 7, kind: output, shape index: {2}]
  %8 = xla_tuple %s5, %s6, %s7
  %s9 = sld [smem:[#allocation0]]
  $region46: #{naf_forward.1} parent=0
    _
  %s11 = ssub.s32 1, %s9
  %s12 = scalar_select 0, %s11, %s9
  $region1: #{naf_forward.1} parent=0
    #allocation2 [shape = 'u8[4096]{0}', space=vmem, size = 0x1000, scoped, tag = 'output window, operand 2, single buffered']
    #allocation3 [shape = 's32[1]{0}', space=sflag, size = 0x4, scoped, tag = 'scoped memory for naf_forward.1']
    %13 = vsyncpa [#allocation3], 0
    // Predicated region
    $region2: #{naf_forward.1} parent=1 // pred_check
      _
    $region3: #{naf_forward.1} parent=1 // pred_check_branch
      %15 = sbr.rel (0) target = $region5
    $region4: #{naf_forward.1} parent=1 // pred_region
      _
    $region5: #{naf_forward.1} parent=1 // pred_fallthru
      _
    // Predicated region
    $region6: #{naf_forward.1} parent=1 // pred_check
      _
    $region7: #{naf_forward.1} parent=1 // pred_check_branch
      %17 = sbr.rel (0) target = $region9
    $region8: #{naf_forward.1} parent=1 // pred_region
      _
    $region9: #{naf_forward.1} parent=1 // pred_fallthru
      _
    // Predicated region
    $region10: #{naf_forward.1} parent=1 // pred_check
      _
    $region11: #{naf_forward.1} parent=1 // pred_check_branch
      %19 = sbr.rel (0) target = $region13
    $region12: #{naf_forward.1} parent=1 // pred_region
      _
    $region13: #{naf_forward.1} parent=1 // pred_fallthru
      _
    // Predicated region
    $region14: #{naf_forward.1} parent=1 // pred_check
      _
    $region15: #{naf_forward.1} parent=1 // pred_check_branch
      %21 = sbr.rel (0) target = $region17
    $region16: #{naf_forward.1} parent=1 // pred_region
      _
    $region17: #{naf_forward.1} parent=1 // pred_fallthru
      _
    // Predicated region
    $region18: #{naf_forward.1} parent=1 // pred_check
      _
    $region19: #{naf_forward.1} parent=1 // pred_check_branch
      %23 = sbr.rel (0) target = $region21
    $region20: #{naf_forward.1} parent=1 // pred_region
      _
    $region21: #{naf_forward.1} parent=1 // pred_fallthru
      _
    %v25 = vld [vmem:[%s0] sm:$0xff]
    %v26 = vpack.c.bf16 %v25, %v25
    %v27 = vld [vmem:[%s1] sm:$0xf]
    %v28 = vld [vmem:[%s1 + $0x4] sm:$0xf]
    %v29 = vld [vmem:[%s2] sm:$0x1]
    %v31 = vperm.slane %v29, 0
    %v35 = vunpack.c.l.b16 %v27
    %v36 = vunpack.c.l.b16 %v28
    %v37 = vpack.c.b16 %v36, %v35
    %vm39 = vcmask 130048
    %v41 = vsel %vm39, %v26, 0
    %43 = vmatpush.bf16.msra.mxu0 0
    %44 = vmatpush.bf16.msra.mxu0 0
    %45 = vmatpush.bf16.msra.mxu0 0
    %46 = vmatpush.bf16.msra.mxu0 0
    %47 = vmatpush.bf16.msra.mxu0 0
    %48 = vmatpush.bf16.msra.mxu0 0
    %49 = vmatpush.bf16.msra.mxu0 0
    %50 = vmatpush.bf16.msra.mxu0 %v37
    %51 = vmatmul.bf16.gmra.mxu0 %v41
    %v52 = vpop.f32.mrf.mxu0
    %v53 = vadd.f32 %v31, %v52
    %v54 = vpop.f32.mrf.mxu0
    %55 = vdwg.mxu0
    %v56 = vmax.f32 %v53, 0.0
    %v57 = vpack.c.bf16 %v56, %v56
    %v58 = vld [vmem:[%s3] sm:$0xf]
    %v59 = vld [vmem:[%s3 + $0x4] sm:$0xf]
    %v60 = vld [vmem:[%s3 + $0x8] sm:$0xf]
    %v61 = vld [vmem:[%s3 + $0xc] sm:$0xf]
    %v62 = vld [vmem:[%s3 + $0x10] sm:$0xf]
    %v63 = vld [vmem:[%s3 + $0x14] sm:$0xf]
    %v64 = vld [vmem:[%s3 + $0x18] sm:$0xf]
    %v65 = vld [vmem:[%s3 + $0x1c] sm:$0xf]
    %v66 = vld [vmem:[%s3 + $0x20] sm:$0xf]
    %v67 = vld [vmem:[%s3 + $0x24] sm:$0xf]
    %v68 = vld [vmem:[%s3 + $0x28] sm:$0xf]
    %v69 = vld [vmem:[%s3 + $0x2c] sm:$0xf]
    %v70 = vld [vmem:[%s3 + $0x30] sm:$0xf]
    %v71 = vld [vmem:[%s3 + $0x34] sm:$0xf]
    %v72 = vld [vmem:[%s3 + $0x38] sm:$0xf]
    %v73 = vld [vmem:[%s3 + $0x3c] sm:$0xf]
    %v74 = vld [vmem:[%s4] sm:$0x1]
    %v76 = vperm.slane %v74, 0
    %v94 = vunpack.c.l.b16 %v58
    %v95 = vunpack.c.l.b16 %v59
    %v96 = vunpack.c.l.b16 %v60
    %v97 = vunpack.c.l.b16 %v61
    %v98 = vunpack.c.l.b16 %v62
    %v99 = vunpack.c.l.b16 %v63
    %v100 = vunpack.c.l.b16 %v64
    %v101 = vunpack.c.l.b16 %v65
    %v102 = vunpack.c.l.b16 %v66
    %v103 = vunpack.c.l.b16 %v67
    %v104 = vunpack.c.l.b16 %v68
    %v105 = vunpack.c.l.b16 %v69
    %v106 = vunpack.c.l.b16 %v70
    %v107 = vunpack.c.l.b16 %v71
    %v108 = vunpack.c.l.b16 %v72
    %v109 = vunpack.c.l.b16 %v73
    %v110 = vpack.c.b16 %v95, %v94
    %v111 = vpack.c.b16 %v97, %v96
    %v112 = vpack.c.b16 %v99, %v98
    %v113 = vpack.c.b16 %v101, %v100
    %v114 = vpack.c.b16 %v103, %v102
    %v115 = vpack.c.b16 %v105, %v104
    %v116 = vpack.c.b16 %v107, %v106
    %v117 = vpack.c.b16 %v109, %v108
    %126 = vmatpush.bf16.msra.mxu0 %v117
    %127 = vmatpush.bf16.msra.mxu0 %v116
    %128 = vmatpush.bf16.msra.mxu0 %v115
    %129 = vmatpush.bf16.msra.mxu0 %v114
    %130 = vmatpush.bf16.msra.mxu0 %v113
    %131 = vmatpush.bf16.msra.mxu0 %v112
    %132 = vmatpush.bf16.msra.mxu0 %v111
    %133 = vmatpush.bf16.msra.mxu0 %v110
    %134 = vmatmul.bf16.gmra.mxu0 %v57
    %v135 = vpop.f32.mrf.mxu0
    %v136 = vadd.f32 %v76, %v135
    %v137 = vpop.f32.mrf.mxu0
    %138 = vdwg.mxu0
    %vm139 = vcmask 7168
    %140 = vst.msk [vmem:[%s5] sm:$0xff] %vm139, %v136
    %142 = vrot.lane.b32.xlu0 %v136, 127
    %v143 = vpop.permute.xlu0 %142
    %vm145 = vcmask 31744
    %146 = vst.msk [vmem:[%s6] sm:$0xff] %vm145, %v143
    %147 = vrot.lane.b32.xlu0 %v136, 123
    %v148 = vpop.permute.xlu0 %147
    %vm150 = vcmask 80896
    %151 = vst.msk [vmem:[#allocation2] sm:$0xff] %vm150, %v148
    // Predicated region
    $region22: #{naf_forward.1} parent=1 // pred_check
      _
    $region23: #{naf_forward.1} parent=1 // pred_check_branch
      %153 = sbr.rel (0) target = $region25
    $region24: #{naf_forward.1} parent=1 // pred_region
      _
    $region25: #{naf_forward.1} parent=1 // pred_fallthru
      _
    // Predicated region
    $region26: #{naf_forward.1} parent=1 // pred_check
      _
    $region27: #{naf_forward.1} parent=1 // pred_check_branch
      %155 = sbr.rel (0) target = $region29
    $region28: #{naf_forward.1} parent=1 // pred_region
      _
    $region29: #{naf_forward.1} parent=1 // pred_fallthru
      _
    // Predicated region
    $region30: #{naf_forward.1} parent=1 // pred_check
      _
    $region31: #{naf_forward.1} parent=1 // pred_check_branch
      %157 = sbr.rel (0) target = $region33
    $region32: #{naf_forward.1} parent=1 // pred_region
      %159 = vsyncadd [#allocation3], 0
      %s161 = sshll.u32 [#allocation2], 4
      %s162 = int_to_ptr.vmem [resolvable:$true] %s161
      %s163 = sshll.u32 %s7, 4
      %s164 = int_to_ptr.hbm [resolvable:$true] %s163
      %166 = dma.vmem_to_hbm [thread:$0]  %s162, 128, %s164, [#allocation3]
    $region33: #{naf_forward.1} parent=1 // pred_fallthru
      _
    // Predicated region
    $region34: #{naf_forward.1} parent=1 // pred_check
      _
    $region35: #{naf_forward.1} parent=1 // pred_check_branch
      %168 = sbr.rel (0) target = $region37
    $region36: #{naf_forward.1} parent=1 // pred_region
      _
    $region37: #{naf_forward.1} parent=1 // pred_fallthru
      _
    // Predicated region
    $region38: #{naf_forward.1} parent=1 // pred_check
      _
    $region39: #{naf_forward.1} parent=1 // pred_check_branch
      %170 = sbr.rel (0) target = $region41
    $region40: #{naf_forward.1} parent=1 // pred_region
      _
    $region41: #{naf_forward.1} parent=1 // pred_fallthru
      _
    // Predicated region
    $region42: #{naf_forward.1} parent=1 // pred_check
      _
    $region43: #{naf_forward.1} parent=1 // pred_check_branch
      %172 = sbr.rel (0) target = $region45
    $region44: #{naf_forward.1} parent=1 // pred_region
      %174 = dma.done [#allocation3], 128
    $region45: #{naf_forward.1} parent=1 // pred_fallthru
      _
    %175 = vsyncpa [#allocation3], 1

</llo_original>
